<compile_context>
chip_gen: v5e
topology: v5e:2x2
jax: 0.10.0
libtpu: 0.0.40
codegen_flags: <defaults>
</compile_context>

<pallas_src>
import math

import jax
import jax.numpy as jnp
from jax.experimental import pallas as pl
from jax.experimental.pallas import tpu as pltpu

_LANE = 128
_SUBLANE_BYTES = 32          # 8 sublanes x 4 bytes = one f32 vreg row-group
_MAX_LANE_COLS = 2048
# ~3.5 MiB per block: 2x double-buffered input + 2x output = 14 MiB, leaving
# headroom under v5e's 16 MiB scoped-VMEM default (and v6e/v7x's 32 MiB).
_MAX_BLOCK_BYTES = 3 * 1024 * 1024 + 512 * 1024


def _identity_copy_kernel(x_ref, o_ref):
    # PixelNorm.forward(input) == input  ->  pure pass-through copy.
    o_ref[...] = x_ref[...]


def _round_up(n, m):
    return -(-n // m) * m


def _pixel_norm_copy(x, donate_input=False):
    orig_shape = x.shape
    total = math.prod(orig_shape)
    if total == 0:
        return x
    itemsize = jnp.dtype(x.dtype).itemsize
    # Packed dtypes tile sublanes as (32 / itemsize, 128): 8 f32, 16 bf16, 32 i8.
    sublane = max(_SUBLANE_BYTES // itemsize, 8)

    # --- lane-dense 2D view -------------------------------------------------
    pad = 0
    if total % _LANE == 0:
        cols = _LANE
        while cols * 2 <= _MAX_LANE_COLS and total % (cols * 2) == 0:
            cols *= 2
        rows = total // cols
        flat = x.reshape(rows, cols)
    else:
        # Ragged size: pad the flat view up to a lane/sublane-dense slab so the
        # kernel keeps unmasked full-vreg stores and bounded, pipelined blocks.
        cols = _LANE
        rows = _round_up(-(-total // cols), sublane)
        pad = rows * cols - total
        flat = jnp.pad(x.reshape(-1), (0, pad)).reshape(rows, cols)

    # --- row tile: largest sublane multiple that fits the byte budget -------
    budget_rows = max(_MAX_BLOCK_BYTES // (cols * itemsize), 1)
    tile_r = min(rows, max((budget_rows // sublane) * sublane, sublane))
    # Guarantee >= 2 grid steps when rows allow it so the "parallel" axis can
    # shard the copy across both TensorCores on v7x.
    if tile_r >= rows and rows >= 2 * sublane:
        tile_r = _round_up(-(-rows // 2), sublane)
    tile_r = min(tile_r, rows)
    grid_r = -(-rows // tile_r)      # cdiv; Pallas masks the ragged tail block

    out2 = pl.pallas_call(
        _identity_copy_kernel,
        out_shape=jax.ShapeDtypeStruct((rows, cols), x.dtype),
        grid=(grid_r,),
        in_specs=[pl.BlockSpec((tile_r, cols), lambda i: (i, 0))],
        out_specs=pl.BlockSpec((tile_r, cols), lambda i: (i, 0)),
        compiler_params=pltpu.CompilerParams(
            dimension_semantics=("parallel",),
            vmem_limit_bytes=32 * 1024 * 1024,
        ),
        cost_estimate=pl.CostEstimate(
            flops=0,
            transcendentals=0,
            bytes_accessed=2 * rows * cols * itemsize,
        ),
        input_output_aliases=({0: 0} if donate_input else {}),
    )(flat)

    if pad:
        out2 = out2.reshape(-1)[:total]
    return out2.reshape(orig_shape)


def pixel_norm(x, force_kernel=False, donate_input=False):
    """PixelNorm forward: identity.

    Default path returns `x` unchanged (zero HBM traffic -- beats any copy
    kernel's 2x-bytes roofline).  `force_kernel=True` materializes the result
    via the tiled, lane-dense Pallas copy kernel.
    """
    if not force_kernel:
        return x
    return _pixel_norm_copy(x, donate_input=donate_input)


if __name__ == "__main__":
    key = jax.random.PRNGKey(0)
    k1, k2, k3 = jax.random.split(key, 3)

    # Typical PixelNorm input in StyleGAN: NCHW feature maps.
    x = jax.random.normal(k1, (2, 4, 16, 16), dtype=jnp.float32)

    # Default fast path: pure identity (the review's top recommendation).
    out_fast = pixel_norm(x)
    assert out_fast.shape == x.shape and out_fast.dtype == x.dtype
    assert jnp.array_equal(out_fast, x)

    # Explicit Pallas copy kernel path.
    out = jax.block_until_ready(pixel_norm(x, force_kernel=True))
    assert out.shape == x.shape and out.dtype == x.dtype
    assert jnp.array_equal(out, x)

    # Larger 128-divisible case exercises the multi-step "parallel" grid.
    z = jax.random.normal(k3, (8, 64, 64), dtype=jnp.float32)
    out_z = jax.block_until_ready(pixel_norm(z, force_kernel=True))
    assert out_z.shape == z.shape and out_z.dtype == z.dtype
    assert jnp.array_equal(out_z, z)

    # Ragged / non-128-divisible bf16 case exercises the padded fallback and
    # the packed-dtype (16, 128) sublane tiling.
    y = jax.random.normal(k2, (2, 3, 7), dtype=jnp.bfloat16)
    out_y = jax.block_until_ready(pixel_norm(y, force_kernel=True))
    assert out_y.shape == y.shape and out_y.dtype == y.dtype
    assert jnp.array_equal(out_y, y)

    print("KERNEL_OK")
</pallas_src>

<mosaic_0001>
module attributes {stable_mosaic.version = 11 : i64} {
  func.func @_identity_copy_kernel(%arg0: i32, %arg1: memref<1x2048xf32, #tpu.memory_space<vmem>>, %arg2: memref<1x2048xf32, #tpu.memory_space<vmem>>) attributes {dimension_semantics = [#tpu.dimension_semantics<parallel>], iteration_bounds = array<i64: 1>, scalar_prefetch = 0 : i64, scratch_operands = 0 : i64, tpu.core_type = #tpu.core_type<tc>, window_params = [{transform_indices = @transform_0, window_bounds = array<i64: 1, 2048>}, {transform_indices = @transform_1, window_bounds = array<i64: 1, 2048>}]} {
    %c0 = arith.constant 0 : index
    %c0_0 = arith.constant 0 : index
    %0 = vector.load %arg1[%c0, %c0_0] : memref<1x2048xf32, #tpu.memory_space<vmem>>, vector<1x2048xf32>
    %c0_1 = arith.constant 0 : index
    %c0_2 = arith.constant 0 : index
    %1 = vector.load %arg2[%c0_1, %c0_2] : memref<1x2048xf32, #tpu.memory_space<vmem>>, vector<1x2048xf32>
    tpu.vector_store %arg2[%c0_1, %c0_2], %0 {strides = array<i32>} : memref<1x2048xf32, #tpu.memory_space<vmem>>, vector<1x2048xf32>,
    return
  }
  func.func @transform_0(%arg0: i32) -> (i32, i32) {
    %c0_i32 = arith.constant 0 : i32
    %c0_i32_0 = arith.constant 0 : i32
    return %arg0, %c0_i32 : i32, i32
  }
  func.func @transform_1(%arg0: i32) -> (i32, i32) {
    %c0_i32 = arith.constant 0 : i32
    %c0_i32_0 = arith.constant 0 : i32
    return %arg0, %c0_i32 : i32, i32
  }
}

</mosaic_0001>

<llo_original>
// kernel: tpu_custom_call.1
$region0: #{tpu_custom_call.1}
  #allocation0 [shape = 'u32[]', space=smem, size = 0x4, offset = 0x4, fixed_abs, tag = 'smem constant byte address 0x4 - core index']
  #allocation1 [shape = 'u32[72,128]{1,0:T(1,128)}', space=vmem, size = 0x9000, scoped, tag = 'internal scratch']
  %s0 = inlined_call_operand.hbm [shape: f32[1,2048], index: 0, kind: input, shape index: {}]
  %s1 = inlined_call_operand.hbm [shape: f32[1,2048], index: 1, kind: output, shape index: {}]
  %s2 = sld [smem:[#allocation0]]
  $region18: #{tpu_custom_call.1} parent=0
    _
  %s4 = ssub.s32 1, %s2
  %s5 = scalar_select 0, %s4, %s2
  $region1: #{tpu_custom_call.1} parent=0
    #allocation2 [shape = 'u8[8192]{0}', space=vmem, size = 0x2000, scoped, tag = 'input window, operand 0, single buffered']
    #allocation3 [shape = 's32[1]{0}', space=sflag, size = 0x4, scoped, tag = 'scoped memory for tpu_custom_call.1']
    #allocation4 [shape = 's32[1]{0}', space=sflag, size = 0x4, scoped, tag = 'scoped memory for tpu_custom_call.1']
    #allocation5 [shape = 'u8[8192]{0}', space=vmem, size = 0x2000, scoped, tag = 'output window, operand 0, single buffered']
    %6 = vsyncpa [#allocation3], 0
    %7 = vsyncpa [#allocation4], 0
    // Predicated region
    $region2: #{tpu_custom_call.1} parent=1 // pred_check
      _
    $region3: #{tpu_custom_call.1} parent=1 // pred_check_branch
      %9 = sbr.rel (0) target = $region5
    $region4: #{tpu_custom_call.1} parent=1 // pred_region
      %11 = vsyncadd [#allocation3], 0
      %s13 = sshll.u32 %s0, 4
      %s14 = int_to_ptr.hbm [resolvable:$true] %s13
      %s15 = sshll.u32 [#allocation2], 4
      %s16 = int_to_ptr.vmem [resolvable:$true] %s15
      %18 = dma.hbm_to_vmem [thread:$0]  %s14, 256, %s16, [#allocation3]
    $region5: #{tpu_custom_call.1} parent=1 // pred_fallthru
      _
    // Predicated region
    $region6: #{tpu_custom_call.1} parent=1 // pred_check
      _
    $region7: #{tpu_custom_call.1} parent=1 // pred_check_branch
      %20 = sbr.rel (0) target = $region9
    $region8: #{tpu_custom_call.1} parent=1 // pred_region
      %22 = dma.done [#allocation3], 256
    $region9: #{tpu_custom_call.1} parent=1 // pred_fallthru
      _
    %v23 = vld [vmem:[#allocation2] sm:$0xff]
    %v24 = vld [vmem:[#allocation2 + $0x8] sm:$0xff]
    %25 = vst [vmem:[#allocation5] sm:$0xff] %v23
    %26 = vst [vmem:[#allocation5 + $0x8] sm:$0xff] %v24
    // Predicated region
    $region10: #{tpu_custom_call.1} parent=1 // pred_check
      _
    $region11: #{tpu_custom_call.1} parent=1 // pred_check_branch
      %28 = sbr.rel (0) target = $region13
    $region12: #{tpu_custom_call.1} parent=1 // pred_region
      %30 = vsyncadd [#allocation4], 0
      %s32 = sshll.u32 [#allocation5], 4
      %s33 = int_to_ptr.vmem [resolvable:$true] %s32
      %s34 = sshll.u32 %s1, 4
      %s35 = int_to_ptr.hbm [resolvable:$true] %s34
      %37 = dma.vmem_to_hbm [thread:$0]  %s33, 256, %s35, [#allocation4]
    $region13: #{tpu_custom_call.1} parent=1 // pred_fallthru
      _
    // Predicated region
    $region14: #{tpu_custom_call.1} parent=1 // pred_check
      _
    $region15: #{tpu_custom_call.1} parent=1 // pred_check_branch
      %39 = sbr.rel (0) target = $region17
    $region16: #{tpu_custom_call.1} parent=1 // pred_region
      %41 = dma.done [#allocation4], 256
    $region17: #{tpu_custom_call.1} parent=1 // pred_fallthru
      _
    %42 = vsyncpa [#allocation3], 1
    %43 = vsyncpa [#allocation4], 1

</llo_original>
